<compile_context>
chip_gen: v5e
topology: v5e:2x2
jax: 0.10.0
libtpu: 0.0.40
codegen_flags: <defaults>
</compile_context>

<pallas_src>
import functools

import jax
import jax.numpy as jnp
from jax import lax
from jax.experimental import pallas as pl
from jax.experimental.pallas import tpu as pltpu


def _round_up(x, m):
    return ((x + m - 1) // m) * m


def _pad_to(x, shape):
    return jnp.pad(x, [(0, s - d) for d, s in zip(x.shape, shape)])


# ---------------------------------------------------------------------------
# Kernel 1: tanh-RNN recurrence, T_CHUNK timesteps per grid iteration.
# Grid = (batch_tiles ["parallel"], time_chunks ["arbitrary"]).
# ---------------------------------------------------------------------------
def _recurrence_kernel(xw_ref, whh_ref, h0_ref, h_seq_ref, h_scratch,
                       *, t_chunk):
    """
    xw_ref    : (t_chunk, TB, H_p)  precomputed x_t @ W_ih^T + b_ih + b_hh
    whh_ref   : (H_p, H_p)          W_hh^T (zero padded), VMEM resident
    h0_ref    : (TB, H_p)           initial hidden-state tile
    h_seq_ref : (t_chunk, TB, H_p)  hidden states for this (time, batch) tile
    h_scratch : (TB, H_p)           VMEM carry across time chunks
    """
    tc = pl.program_id(1)

    @pl.when(tc == 0)
    def _():
        h_scratch[...] = h0_ref[...]

    h = h_scratch[...]
    # Fully unrolled over the small static chunk: the only matmul left on the
    # serial critical path is the (TB, H_p) x (H_p, H_p) recurrence.
    for s in range(t_chunk):
        h = jnp.tanh(xw_ref[s]
                     + jnp.dot(h, whh_ref[...],
                               preferred_element_type=jnp.float32))
        h_seq_ref[s] = h
    h_scratch[...] = h


# ---------------------------------------------------------------------------
# Kernel 2: output projection as a lane-dense tiled GEMM (tm x tn blocks).
# ---------------------------------------------------------------------------
def _proj_kernel(h_ref, who_ref, bo_ref, out_ref):
    out_ref[...] = (jnp.dot(h_ref[...], who_ref[...],
                            preferred_element_type=jnp.float32)
                    + bo_ref[...])


# ---------------------------------------------------------------------------
# Wrapper: Pallas equivalent of Text.forward(inputs, state).
# ---------------------------------------------------------------------------
def text_forward(inputs, state, params, *, proj_dtype=jnp.float32):
    """inputs: (batch, seq) int token ids; state: (1, batch, hidden) f32.

    Returns (output (seq*batch, vocab), new_state (1, batch, hidden)).
    proj_dtype=jnp.bfloat16 runs the projection GEMM in bf16 (f32 accumulate).
    """
    batch, seq_len = inputs.shape
    hidden, vocab = params["W_ih"].shape

    batch_p = _round_up(batch, 8)
    hidden_p = _round_up(hidden, 128)
    vocab_p = _round_up(vocab, 128)

    # Batch tiling: two tiles when they stay (8, ...)-aligned, so the
    # "parallel" batch axis can shard across v7x's two TensorCores.
    if batch_p >= 16 and batch_p % 16 == 0:
        n_btiles = 2
    else:
        n_btiles = 1
    tb = batch_p // n_btiles

    # Time chunking: amortize per-grid-step overhead (~0.35 us each).
    t_chunk = max(1, min(8, seq_len))
    seq_pad = _round_up(seq_len, t_chunk)
    n_tchunks = seq_pad // t_chunk

    # ---- hoisted input gather: x_t @ W_ih^T for one-hot x_t is a row lookup.
    # Done once, outside the serial loop; bias folded in.  Padded batch rows /
    # hidden cols are exactly zero, so padded hidden state stays zero.
    ids = inputs.T.astype(jnp.int32)                           # (seq, batch)
    bh = params["b_ih"] + params["b_hh"]
    xw = jnp.take(params["W_ih"].T, ids, axis=0) + bh          # (seq, B, H)
    xw = _pad_to(xw, (seq_pad, batch_p, hidden_p))

    whh = _pad_to(params["W_hh"].T, (hidden_p, hidden_p))      # (H_p, H_p)
    h0 = _pad_to(state[0], (batch_p, hidden_p))                # (B_p, H_p)

    # ---- recurrence: serial over time chunks, parallel over batch tiles ----
    rec_kernel = functools.partial(_recurrence_kernel, t_chunk=t_chunk)
    h_seq = pl.pallas_call(
        rec_kernel,
        grid_spec=pltpu.PrefetchScalarGridSpec(
            num_scalar_prefetch=0,
            grid=(n_btiles, n_tchunks),
            in_specs=[
                pl.BlockSpec((t_chunk, tb, hidden_p),
                             lambda bi, tc: (tc, bi, 0)),
                pl.BlockSpec((hidden_p, hidden_p), lambda bi, tc: (0, 0)),
                pl.BlockSpec((tb, hidden_p), lambda bi, tc: (bi, 0)),
            ],
            out_specs=pl.BlockSpec((t_chunk, tb, hidden_p),
                                   lambda bi, tc: (tc, bi, 0)),
            scratch_shapes=[pltpu.VMEM((tb, hidden_p), jnp.float32)],
        ),
        out_shape=jax.ShapeDtypeStruct((seq_pad, batch_p, hidden_p),
                                       jnp.float32),
        compiler_params=pltpu.CompilerParams(
            dimension_semantics=("parallel", "arbitrary")),
    )(xw, whh, h0)

    # Final state comes straight from the hidden-state sequence (no extra
    # per-step hT store in the kernel).
    new_state = h_seq[seq_len - 1, :batch, :hidden][None]      # (1, B, H)

    # ---- output projection: tiled over rows AND vocab, parallel/parallel ----
    M = seq_len * batch_p                       # multiple of 8 by construction
    tm = M if M <= 512 else 512
    Mp = _round_up(M, tm)
    tn = vocab_p if vocab_p <= 512 else 512
    Np = _round_up(vocab_p, tn)

    h_flat = h_seq[:seq_len].reshape(M, hidden_p)
    if Mp != M:
        h_flat = jnp.pad(h_flat, ((0, Mp - M), (0, 0)))
    who = _pad_to(params["W_lin"].T, (hidden_p, Np))           # (H_p, N_p)
    bo = _pad_to(params["b_lin"].reshape(1, vocab), (1, Np))   # stays f32

    if proj_dtype != jnp.float32:
        h_flat = h_flat.astype(proj_dtype)
        who = who.astype(proj_dtype)

    logits = pl.pallas_call(
        _proj_kernel,
        grid=(Mp // tm, Np // tn),
        in_specs=[
            pl.BlockSpec((tm, hidden_p), lambda i, j: (i, 0)),
            pl.BlockSpec((hidden_p, tn), lambda i, j: (0, j)),
            pl.BlockSpec((1, tn), lambda i, j: (0, j)),
        ],
        out_specs=pl.BlockSpec((tm, tn), lambda i, j: (i, j)),
        out_shape=jax.ShapeDtypeStruct((Mp, Np), jnp.float32),
        compiler_params=pltpu.CompilerParams(
            dimension_semantics=("parallel", "parallel")),
    )(h_flat, who, bo)

    # Strip padding; row order stays (time, batch) == PyTorch Y.reshape(-1, H).
    logits = logits[:M, :vocab].reshape(seq_len, batch_p, vocab)[:, :batch, :]
    output = logits.reshape(seq_len * batch, vocab)
    return output, new_state


# ---------------------------------------------------------------------------
# Pure-JAX reference matching the PyTorch forward.
# ---------------------------------------------------------------------------
def text_forward_ref(inputs, state, params):
    hidden, vocab = params["W_ih"].shape
    X = jax.nn.one_hot(inputs.T, vocab, dtype=jnp.float32)
    h0 = state[0]

    def step(h, x_t):
        h = jnp.tanh(x_t @ params["W_ih"].T + params["b_ih"]
                     + h @ params["W_hh"].T + params["b_hh"])
        return h, h

    hT, Y = lax.scan(step, h0, X)
    out = Y.reshape(-1, hidden) @ params["W_lin"].T + params["b_lin"]
    return out, hT[None]


def init_params(key, vocab_size, num_hiddens):
    """Deterministic init matching the PyTorch parameter shapes."""
    ks = jax.random.split(key, 6)
    k_rnn = 1.0 / jnp.sqrt(num_hiddens)
    u = lambda k, shape, bound: jax.random.uniform(
        k, shape, jnp.float32, minval=-bound, maxval=bound)
    return {
        "W_ih": u(ks[0], (num_hiddens, vocab_size), k_rnn),   # rnn.weight_ih_l0
        "W_hh": u(ks[1], (num_hiddens, num_hiddens), k_rnn),  # rnn.weight_hh_l0
        "b_ih": u(ks[2], (num_hiddens,), k_rnn),              # rnn.bias_ih_l0
        "b_hh": u(ks[3], (num_hiddens,), k_rnn),              # rnn.bias_hh_l0
        "W_lin": u(ks[4], (vocab_size, num_hiddens), k_rnn),  # linear.weight
        "b_lin": u(ks[5], (vocab_size,), k_rnn),              # linear.bias
    }


if __name__ == "__main__":
    # ---- main test: shapes consistent with the module, f32 parity ----
    BATCH, SEQ, VOCAB, HIDDEN = 2, 8, 32, 32

    key = jax.random.PRNGKey(0)
    k_par, k_inp = jax.random.split(key)
    params = init_params(k_par, VOCAB, HIDDEN)
    inputs = jax.random.randint(k_inp, (BATCH, SEQ), 0, VOCAB, dtype=jnp.int32)
    # begin_state: zeros of shape (num_directions * num_layers, batch, hidden)
    state = jnp.zeros((1, BATCH, HIDDEN), jnp.float32)

    out, new_state = jax.jit(text_forward)(inputs, state, params)
    out = jax.block_until_ready(out)
    new_state = jax.block_until_ready(new_state)

    out_ref, state_ref = text_forward_ref(inputs, state, params)
    assert out.shape == (SEQ * BATCH, VOCAB)
    assert new_state.shape == (1, BATCH, HIDDEN)
    assert jnp.allclose(out, out_ref, atol=1e-5, rtol=1e-5)
    assert jnp.allclose(new_state, state_ref, atol=1e-5, rtol=1e-5)

    # ---- bf16 projection path (f32 accumulation): looser tolerance ----
    out_bf16, state_bf16 = jax.jit(
        functools.partial(text_forward, proj_dtype=jnp.bfloat16)
    )(inputs, state, params)
    out_bf16 = jax.block_until_ready(out_bf16)
    assert jnp.allclose(out_bf16, out_ref, atol=5e-2, rtol=5e-2)
    assert jnp.allclose(state_bf16, state_ref, atol=1e-5, rtol=1e-5)

    # ---- ragged shapes: exercise batch/seq/feature padding, multiple time
    #      chunks, two batch tiles, and a nonzero initial state ----
    B2, S2, V2, H2 = 9, 10, 40, 48
    params2 = init_params(jax.random.PRNGKey(1), V2, H2)
    inputs2 = jax.random.randint(jax.random.PRNGKey(2), (B2, S2), 0, V2,
                                 dtype=jnp.int32)
    state2 = 0.1 * jax.random.normal(jax.random.PRNGKey(3), (1, B2, H2),
                                     jnp.float32)
    out2, ns2 = jax.jit(text_forward)(inputs2, state2, params2)
    out2 = jax.block_until_ready(out2)
    out2_ref, ns2_ref = text_forward_ref(inputs2, state2, params2)
    assert out2.shape == (S2 * B2, V2)
    assert jnp.allclose(out2, out2_ref, atol=1e-5, rtol=1e-5)
    assert jnp.allclose(ns2, ns2_ref, atol=1e-5, rtol=1e-5)

    print("KERNEL_OK")
</pallas_src>

<mosaic_0001>
module attributes {stable_mosaic.version = 11 : i64} {
  func.func @_proj_kernel(%arg0: i32, %arg1: i32, %arg2: memref<64x128xf32, #tpu.memory_space<vmem>>, %arg3: memref<128x128xf32, #tpu.memory_space<vmem>>, %arg4: memref<1x128xf32, #tpu.memory_space<vmem>>, %arg5: memref<64x128xf32, #tpu.memory_space<vmem>>) attributes {dimension_semantics = [#tpu.dimension_semantics<parallel>, #tpu.dimension_semantics<parallel>], iteration_bounds = array<i64: 1, 1>, scalar_prefetch = 0 : i64, scratch_operands = 0 : i64, tpu.core_type = #tpu.core_type<tc>, window_params = [{transform_indices = @transform_0, window_bounds = array<i64: 64, 128>}, {transform_indices = @transform_1, window_bounds = array<i64: 128, 128>}, {transform_indices = @transform_2, window_bounds = array<i64: 1, 128>}, {transform_indices = @transform_3, window_bounds = array<i64: 64, 128>}]} {
    %c0 = arith.constant 0 : index
    %c0_0 = arith.constant 0 : index
    %0 = vector.load %arg2[%c0, %c0_0] : memref<64x128xf32, #tpu.memory_space<vmem>>, vector<64x128xf32>
    %c0_1 = arith.constant 0 : index
    %c0_2 = arith.constant 0 : index
    %1 = vector.load %arg3[%c0_1, %c0_2] : memref<128x128xf32, #tpu.memory_space<vmem>>, vector<128x128xf32>
    %cst = arith.constant dense<0.000000e+00> : vector<64x128xf32>
    %2 = tpu.matmul %0, %1, %cst {dimension_numbers = #tpu.dot_dimension_numbers<[1], [0], [0], [1], [0, 0, 1, 1], [], []>} : vector<64x128xf32>, vector<128x128xf32>, vector<64x128xf32> -> vector<64x128xf32>
    %c0_3 = arith.constant 0 : index
    %c0_4 = arith.constant 0 : index
    %3 = vector.load %arg4[%c0_3, %c0_4] : memref<1x128xf32, #tpu.memory_space<vmem>>, vector<1x128xf32>
    %4 = vector.broadcast %3 : vector<1x128xf32> to vector<64x128xf32>
    %5 = arith.addf %2, %4 : vector<64x128xf32>
    %c0_5 = arith.constant 0 : index
    %c0_6 = arith.constant 0 : index
    %6 = vector.load %arg5[%c0_5, %c0_6] : memref<64x128xf32, #tpu.memory_space<vmem>>, vector<64x128xf32>
    tpu.vector_store %arg5[%c0_5, %c0_6], %5 {strides = array<i32>} : memref<64x128xf32, #tpu.memory_space<vmem>>, vector<64x128xf32>,
    return
  }
  func.func @transform_0(%arg0: i32, %arg1: i32) -> (i32, i32) {
    %c0_i32 = arith.constant 0 : i32
    %c0_i32_0 = arith.constant 0 : i32
    return %arg0, %c0_i32 : i32, i32
  }
  func.func @transform_1(%arg0: i32, %arg1: i32) -> (i32, i32) {
    %c0_i32 = arith.constant 0 : i32
    %c0_i32_0 = arith.constant 0 : i32
    return %c0_i32, %arg1 : i32, i32
  }
  func.func @transform_2(%arg0: i32, %arg1: i32) -> (i32, i32) {
    %c0_i32 = arith.constant 0 : i32
    %c0_i32_0 = arith.constant 0 : i32
    return %c0_i32, %arg1 : i32, i32
  }
  func.func @transform_3(%arg0: i32, %arg1: i32) -> (i32, i32) {
    %c0_i32 = arith.constant 0 : i32
    return %arg0, %arg1 : i32, i32
  }
}

module attributes {stable_mosaic.version = 11 : i64} {
  func.func @_recurrence_kernel(%arg0: i32, %arg1: i32, %arg2: memref<8x8x128xf32, #tpu.memory_space<vmem>>, %arg3: memref<128x128xf32, #tpu.memory_space<vmem>>, %arg4: memref<8x128xf32, #tpu.memory_space<vmem>>, %arg5: memref<8x8x128xf32, #tpu.memory_space<vmem>>, %arg6: memref<8x128xf32, #tpu.memory_space<vmem>>) attributes {dimension_semantics = [#tpu.dimension_semantics<parallel>, #tpu.dimension_semantics<arbitrary>], iteration_bounds = array<i64: 1, 1>, scalar_prefetch = 0 : i64, scratch_operands = 1 : i64, tpu.core_type = #tpu.core_type<tc>, window_params = [{transform_indices = @transform_0, window_bounds = array<i64: 8, 8, 128>}, {pipeline_mode = #tpu.pipeline_mode<synchronous>, transform_indices = @transform_1, window_bounds = array<i64: 128, 128>}, {transform_indices = @transform_2, window_bounds = array<i64: 8, 128>}, {transform_indices = @transform_3, window_bounds = array<i64: 8, 8, 128>}]} {
    %c0_i32 = arith.constant 0 : i32
    %0 = arith.cmpi eq, %arg1, %c0_i32 : i32
    %1 = arith.extui %0 : i1 to i32
    %c0_i32_0 = arith.constant 0 : i32
    %2 = arith.cmpi ne, %1, %c0_i32_0 : i32
    scf.if %2 {
      %c0_68 = arith.constant 0 : index
      %c0_69 = arith.constant 0 : index
      %77 = vector.load %arg4[%c0_68, %c0_69] : memref<8x128xf32, #tpu.memory_space<vmem>>, vector<8x128xf32>
      %c0_70 = arith.constant 0 : index
      %c0_71 = arith.constant 0 : index
      %78 = vector.load %arg6[%c0_70, %c0_71] : memref<8x128xf32, #tpu.memory_space<vmem>>, vector<8x128xf32>
      tpu.vector_store %arg6[%c0_70, %c0_71], %77 {strides = array<i32>} : memref<8x128xf32, #tpu.memory_space<vmem>>, vector<8x128xf32>,
    } else {
    }
    %c0 = arith.constant 0 : index
    %c0_1 = arith.constant 0 : index
    %3 = vector.load %arg6[%c0, %c0_1] : memref<8x128xf32, #tpu.memory_space<vmem>>, vector<8x128xf32>
    %c0_2 = arith.constant 0 : index
    %c0_3 = arith.constant 0 : index
    %c0_4 = arith.constant 0 : index
    %4 = vector.load %arg2[%c0_2, %c0_3, %c0_4] : memref<8x8x128xf32, #tpu.memory_space<vmem>>, vector<1x8x128xf32>
    %5 = vector.shape_cast %4 : vector<1x8x128xf32> to vector<8x128xf32>
    %c0_5 = arith.constant 0 : index
    %c0_6 = arith.constant 0 : index
    %6 = vector.load %arg3[%c0_5, %c0_6] : memref<128x128xf32, #tpu.memory_space<vmem>>, vector<128x128xf32>
    %cst = arith.constant dense<0.000000e+00> : vector<8x128xf32>
    %7 = tpu.matmul %3, %6, %cst {dimension_numbers = #tpu.dot_dimension_numbers<[1], [0], [0], [1], [0, 0, 1, 1], [], []>} : vector<8x128xf32>, vector<128x128xf32>, vector<8x128xf32> -> vector<8x128xf32>
    %8 = arith.addf %5, %7 : vector<8x128xf32>
    %9 = math.tanh %8 : vector<8x128xf32>
    %c0_7 = arith.constant 0 : index
    %c0_8 = arith.constant 0 : index
    %c0_9 = arith.constant 0 : index
    %10 = vector.load %arg5[%c0_7, %c0_8, %c0_9] : memref<8x8x128xf32, #tpu.memory_space<vmem>>, vector<1x8x128xf32>
    %11 = vector.shape_cast %10 : vector<1x8x128xf32> to vector<8x128xf32>
    %12 = vector.shape_cast %9 : vector<8x128xf32> to vector<1x8x128xf32>
    tpu.vector_store %arg5[%c0_7, %c0_8, %c0_9], %12 {strides = array<i32>} : memref<8x8x128xf32, #tpu.memory_space<vmem>>, vector<1x8x128xf32>,
    %c1 = arith.constant 1 : index
    %c0_10 = arith.constant 0 : index
    %c0_11 = arith.constant 0 : index
    %13 = vector.load %arg2[%c1, %c0_10, %c0_11] : memref<8x8x128xf32, #tpu.memory_space<vmem>>, vector<1x8x128xf32>
    %14 = vector.shape_cast %13 : vector<1x8x128xf32> to vector<8x128xf32>
    %c0_12 = arith.constant 0 : index
    %c0_13 = arith.constant 0 : index
    %15 = vector.load %arg3[%c0_12, %c0_13] : memref<128x128xf32, #tpu.memory_space<vmem>>, vector<128x128xf32>
    %cst_14 = arith.constant dense<0.000000e+00> : vector<8x128xf32>
    %16 = tpu.matmul %9, %15, %cst_14 {dimension_numbers = #tpu.dot_dimension_numbers<[1], [0], [0], [1], [0, 0, 1, 1], [], []>} : vector<8x128xf32>, vector<128x128xf32>, vector<8x128xf32> -> vector<8x128xf32>
    %17 = arith.addf %14, %16 : vector<8x128xf32>
    %18 = math.tanh %17 : vector<8x128xf32>
    %c1_15 = arith.constant 1 : index
    %c0_16 = arith.constant 0 : index
    %c0_17 = arith.constant 0 : index
    %19 = vector.load %arg5[%c1_15, %c0_16, %c0_17] : memref<8x8x128xf32, #tpu.memory_space<vmem>>, vector<1x8x128xf32>
    %20 = vector.shape_cast %19 : vector<1x8x128xf32> to vector<8x128xf32>
    %21 = vector.shape_cast %18 : vector<8x128xf32> to vector<1x8x128xf32>
    tpu.vector_store %arg5[%c1_15, %c0_16, %c0_17], %21 {strides = array<i32>} : memref<8x8x128xf32, #tpu.memory_space<vmem>>, vector<1x8x128xf32>,
    %c2 = arith.constant 2 : index
    %c0_18 = arith.constant 0 : index
    %c0_19 = arith.constant 0 : index
    %22 = vector.load %arg2[%c2, %c0_18, %c0_19] : memref<8x8x128xf32, #tpu.memory_space<vmem>>, vector<1x8x128xf32>
    %23 = vector.shape_cast %22 : vector<1x8x128xf32> to vector<8x128xf32>
    %c0_20 = arith.constant 0 : index
    %c0_21 = arith.constant 0 : index
    %24 = vector.load %arg3[%c0_20, %c0_21] : memref<128x128xf32, #tpu.memory_space<vmem>>, vector<128x128xf32>
    %cst_22 = arith.constant dense<0.000000e+00> : vector<8x128xf32>
    %25 = tpu.matmul %18, %24, %cst_22 {dimension_numbers = #tpu.dot_dimension_numbers<[1], [0], [0], [1], [0, 0, 1, 1], [], []>} : vector<8x128xf32>, vector<128x128xf32>, vector<8x128xf32> -> vector<8x128xf32>
    %26 = arith.addf %23, %25 : vector<8x128xf32>
    %27 = math.tanh %26 : vector<8x128xf32>
    %c2_23 = arith.constant 2 : index
    %c0_24 = arith.constant 0 : index
    %c0_25 = arith.constant 0 : index
    %28 = vector.load %arg5[%c2_23, %c0_24, %c0_25] : memref<8x8x128xf32, #tpu.memory_space<vmem>>, vector<1x8x128xf32>
    %29 = vector.shape_cast %28 : vector<1x8x128xf32> to vector<8x128xf32>
    %30 = vector.shape_cast %27 : vector<8x128xf32> to vector<1x8x128xf32>
    tpu.vector_store %arg5[%c2_23, %c0_24, %c0_25], %30 {strides = array<i32>} : memref<8x8x128xf32, #tpu.memory_space<vmem>>, vector<1x8x128xf32>,
    %c3 = arith.constant 3 : index
    %c0_26 = arith.constant 0 : index
    %c0_27 = arith.constant 0 : index
    %31 = vector.load %arg2[%c3, %c0_26, %c0_27] : memref<8x8x128xf32, #tpu.memory_space<vmem>>, vector<1x8x128xf32>
    %32 = vector.shape_cast %31 : vector<1x8x128xf32> to vector<8x128xf32>
    %c0_28 = arith.constant 0 : index
    %c0_29 = arith.constant 0 : index
    %33 = vector.load %arg3[%c0_28, %c0_29] : memref<128x128xf32, #tpu.memory_space<vmem>>, vector<128x128xf32>
    %cst_30 = arith.constant dense<0.000000e+00> : vector<8x128xf32>
    %34 = tpu.matmul %27, %33, %cst_30 {dimension_numbers = #tpu.dot_dimension_numbers<[1], [0], [0], [1], [0, 0, 1, 1], [], []>} : vector<8x128xf32>, vector<128x128xf32>, vector<8x128xf32> -> vector<8x128xf32>
    %35 = arith.addf %32, %34 : vector<8x128xf32>
    %36 = math.tanh %35 : vector<8x128xf32>
    %c3_31 = arith.constant 3 : index
    %c0_32 = arith.constant 0 : index
    %c0_33 = arith.constant 0 : index
    %37 = vector.load %arg5[%c3_31, %c0_32, %c0_33] : memref<8x8x128xf32, #tpu.memory_space<vmem>>, vector<1x8x128xf32>
    %38 = vector.shape_cast %37 : vector<1x8x128xf32> to vector<8x128xf32>
    %39 = vector.shape_cast %36 : vector<8x128xf32> to vector<1x8x128xf32>
    tpu.vector_store %arg5[%c3_31, %c0_32, %c0_33], %39 {strides = array<i32>} : memref<8x8x128xf32, #tpu.memory_space<vmem>>, vector<1x8x128xf32>,
    %c4 = arith.constant 4 : index
    %c0_34 = arith.constant 0 : index
    %c0_35 = arith.constant 0 : index
    %40 = vector.load %arg2[%c4, %c0_34, %c0_35] : memref<8x8x128xf32, #tpu.memory_space<vmem>>, vector<1x8x128xf32>
    %41 = vector.shape_cast %40 : vector<1x8x128xf32> to vector<8x128xf32>
    %c0_36 = arith.constant 0 : index
    %c0_37 = arith.constant 0 : index
    %42 = vector.load %arg3[%c0_36, %c0_37] : memref<128x128xf32, #tpu.memory_space<vmem>>, vector<128x128xf32>
    %cst_38 = arith.constant dense<0.000000e+00> : vector<8x128xf32>
    %43 = tpu.matmul %36, %42, %cst_38 {dimension_numbers = #tpu.dot_dimension_numbers<[1], [0], [0], [1], [0, 0, 1, 1], [], []>} : vector<8x128xf32>, vector<128x128xf32>, vector<8x128xf32> -> vector<8x128xf32>
    %44 = arith.addf %41, %43 : vector<8x128xf32>
    %45 = math.tanh %44 : vector<8x128xf32>
    %c4_39 = arith.constant 4 : index
    %c0_40 = arith.constant 0 : index
    %c0_41 = arith.constant 0 : index
    %46 = vector.load %arg5[%c4_39, %c0_40, %c0_41] : memref<8x8x128xf32, #tpu.memory_space<vmem>>, vector<1x8x128xf32>
    %47 = vector.shape_cast %46 : vector<1x8x128xf32> to vector<8x128xf32>
    %48 = vector.shape_cast %45 : vector<8x128xf32> to vector<1x8x128xf32>
    tpu.vector_store %arg5[%c4_39, %c0_40, %c0_41], %48 {strides = array<i32>} : memref<8x8x128xf32, #tpu.memory_space<vmem>>, vector<1x8x128xf32>,
    %c5 = arith.constant 5 : index
    %c0_42 = arith.constant 0 : index
    %c0_43 = arith.constant 0 : index
    %49 = vector.load %arg2[%c5, %c0_42, %c0_43] : memref<8x8x128xf32, #tpu.memory_space<vmem>>, vector<1x8x128xf32>
    %50 = vector.shape_cast %49 : vector<1x8x128xf32> to vector<8x128xf32>
    %c0_44 = arith.constant 0 : index
    %c0_45 = arith.constant 0 : index
    %51 = vector.load %arg3[%c0_44, %c0_45] : memref<128x128xf32, #tpu.memory_space<vmem>>, vector<128x128xf32>
    %cst_46 = arith.constant dense<0.000000e+00> : vector<8x128xf32>
    %52 = tpu.matmul %45, %51, %cst_46 {dimension_numbers = #tpu.dot_dimension_numbers<[1], [0], [0], [1], [0, 0, 1, 1], [], []>} : vector<8x128xf32>, vector<128x128xf32>, vector<8x128xf32> -> vector<8x128xf32>
    %53 = arith.addf %50, %52 : vector<8x128xf32>
    %54 = math.tanh %53 : vector<8x128xf32>
    %c5_47 = arith.constant 5 : index
    %c0_48 = arith.constant 0 : index
    %c0_49 = arith.constant 0 : index
    %55 = vector.load %arg5[%c5_47, %c0_48, %c0_49] : memref<8x8x128xf32, #tpu.memory_space<vmem>>, vector<1x8x128xf32>
    %56 = vector.shape_cast %55 : vector<1x8x128xf32> to vector<8x128xf32>
    %57 = vector.shape_cast %54 : vector<8x128xf32> to vector<1x8x128xf32>
    tpu.vector_store %arg5[%c5_47, %c0_48, %c0_49], %57 {strides = array<i32>} : memref<8x8x128xf32, #tpu.memory_space<vmem>>, vector<1x8x128xf32>,
    %c6 = arith.constant 6 : index
    %c0_50 = arith.constant 0 : index
    %c0_51 = arith.constant 0 : index
    %58 = vector.load %arg2[%c6, %c0_50, %c0_51] : memref<8x8x128xf32, #tpu.memory_space<vmem>>, vector<1x8x128xf32>
    %59 = vector.shape_cast %58 : vector<1x8x128xf32> to vector<8x128xf32>
    %c0_52 = arith.constant 0 : index
    %c0_53 = arith.constant 0 : index
    %60 = vector.load %arg3[%c0_52, %c0_53] : memref<128x128xf32, #tpu.memory_space<vmem>>, vector<128x128xf32>
    %cst_54 = arith.constant dense<0.000000e+00> : vector<8x128xf32>
    %61 = tpu.matmul %54, %60, %cst_54 {dimension_numbers = #tpu.dot_dimension_numbers<[1], [0], [0], [1], [0, 0, 1, 1], [], []>} : vector<8x128xf32>, vector<128x128xf32>, vector<8x128xf32> -> vector<8x128xf32>
    %62 = arith.addf %59, %61 : vector<8x128xf32>
    %63 = math.tanh %62 : vector<8x128xf32>
    %c6_55 = arith.constant 6 : index
    %c0_56 = arith.constant 0 : index
    %c0_57 = arith.constant 0 : index
    %64 = vector.load %arg5[%c6_55, %c0_56, %c0_57] : memref<8x8x128xf32, #tpu.memory_space<vmem>>, vector<1x8x128xf32>
    %65 = vector.shape_cast %64 : vector<1x8x128xf32> to vector<8x128xf32>
    %66 = vector.shape_cast %63 : vector<8x128xf32> to vector<1x8x128xf32>
    tpu.vector_store %arg5[%c6_55, %c0_56, %c0_57], %66 {strides = array<i32>} : memref<8x8x128xf32, #tpu.memory_space<vmem>>, vector<1x8x128xf32>,
    %c7 = arith.constant 7 : index
    %c0_58 = arith.constant 0 : index
    %c0_59 = arith.constant 0 : index
    %67 = vector.load %arg2[%c7, %c0_58, %c0_59] : memref<8x8x128xf32, #tpu.memory_space<vmem>>, vector<1x8x128xf32>
    %68 = vector.shape_cast %67 : vector<1x8x128xf32> to vector<8x128xf32>
    %c0_60 = arith.constant 0 : index
    %c0_61 = arith.constant 0 : index
    %69 = vector.load %arg3[%c0_60, %c0_61] : memref<128x128xf32, #tpu.memory_space<vmem>>, vector<128x128xf32>
    %cst_62 = arith.constant dense<0.000000e+00> : vector<8x128xf32>
    %70 = tpu.matmul %63, %69, %cst_62 {dimension_numbers = #tpu.dot_dimension_numbers<[1], [0], [0], [1], [0, 0, 1, 1], [], []>} : vector<8x128xf32>, vector<128x128xf32>, vector<8x128xf32> -> vector<8x128xf32>
    %71 = arith.addf %68, %70 : vector<8x128xf32>
    %72 = math.tanh %71 : vector<8x128xf32>
    %c7_63 = arith.constant 7 : index
    %c0_64 = arith.constant 0 : index
    %c0_65 = arith.constant 0 : index
    %73 = vector.load %arg5[%c7_63, %c0_64, %c0_65] : memref<8x8x128xf32, #tpu.memory_space<vmem>>, vector<1x8x128xf32>
    %74 = vector.shape_cast %73 : vector<1x8x128xf32> to vector<8x128xf32>
    %75 = vector.shape_cast %72 : vector<8x128xf32> to vector<1x8x128xf32>
    tpu.vector_store %arg5[%c7_63, %c0_64, %c0_65], %75 {strides = array<i32>} : memref<8x8x128xf32, #tpu.memory_space<vmem>>, vector<1x8x128xf32>,
    %c0_66 = arith.constant 0 : index
    %c0_67 = arith.constant 0 : index
    %76 = vector.load %arg6[%c0_66, %c0_67] : memref<8x128xf32, #tpu.memory_space<vmem>>, vector<8x128xf32>
    tpu.vector_store %arg6[%c0_66, %c0_67], %72 {strides = array<i32>} : memref<8x128xf32, #tpu.memory_space<vmem>>, vector<8x128xf32>,
    return
  }
  func.func @transform_0(%arg0: i32, %arg1: i32) -> (i32, i32, i32) {
    %c0_i32 = arith.constant 0 : i32
    %c0_i32_0 = arith.constant 0 : i32
    return %arg1, %arg0, %c0_i32 : i32, i32, i32
  }
  func.func @transform_1(%arg0: i32, %arg1: i32) -> (i32, i32) {
    %c0_i32 = arith.constant 0 : i32
    %c0_i32_0 = arith.constant 0 : i32
    %c0_i32_1 = arith.constant 0 : i32
    return %c0_i32, %c0_i32_0 : i32, i32
  }
  func.func @transform_2(%arg0: i32, %arg1: i32) -> (i32, i32) {
    %c0_i32 = arith.constant 0 : i32
    %c0_i32_0 = arith.constant 0 : i32
    return %arg0, %c0_i32 : i32, i32
  }
  func.func @transform_3(%arg0: i32, %arg1: i32) -> (i32, i32, i32) {
    %c0_i32 = arith.constant 0 : i32
    %c0_i32_0 = arith.constant 0 : i32
    return %arg1, %arg0, %c0_i32 : i32, i32, i32
  }
}

</mosaic_0001>

<llo_original>
// kernel: text_forward.3
$region0: #{text_forward.3}
  #allocation0 [shape = 'u32[]', space=smem, size = 0x4, offset = 0x4, fixed_abs, tag = 'smem constant byte address 0x4 - core index']
  #allocation1 [shape = 'u32[72,128]{1,0:T(1,128)}', space=vmem, size = 0x9000, scoped, tag = 'internal scratch']
  %s0 = inlined_call_operand.vmem [shape: f32[64,128], index: 0, kind: input, shape index: {}]
  %s1 = inlined_call_operand.vmem [shape: f32[128,128], index: 1, kind: input, shape index: {}]
  %s2 = inlined_call_operand.vmem [shape: f32[1,128], index: 2, kind: input, shape index: {}]
  %s3 = inlined_call_operand.vmem [shape: f32[64,128], index: 3, kind: output, shape index: {}]
  %s4 = sld [smem:[#allocation0]]
  $region22: #{text_forward.3} parent=0
    _
  %s6 = ssub.s32 1, %s4
  %s7 = scalar_select 0, %s6, %s4
  // Predicated region
  $region2: #{text_forward.3} parent=0 // pred_check
    _
  $region3: #{text_forward.3} parent=0 // pred_check_branch
    %9 = sbr.rel (0) target = $region5
  $region4: #{text_forward.3} parent=0 // pred_region
    _
  $region5: #{text_forward.3} parent=0 // pred_fallthru
    _
  // Predicated region
  $region6: #{text_forward.3} parent=0 // pred_check
    _
  $region7: #{text_forward.3} parent=0 // pred_check_branch
    %11 = sbr.rel (0) target = $region9
  $region8: #{text_forward.3} parent=0 // pred_region
    _
  $region9: #{text_forward.3} parent=0 // pred_fallthru
    _
  // Predicated region
  $region10: #{text_forward.3} parent=0 // pred_check
    _
  $region11: #{text_forward.3} parent=0 // pred_check_branch
    %13 = sbr.rel (0) target = $region13
  $region12: #{text_forward.3} parent=0 // pred_region
    _
  $region13: #{text_forward.3} parent=0 // pred_fallthru
    _
  %v14 = vld [vmem:[%s0] sm:$0xff]
  %v15 = vld [vmem:[%s0 + $0x8] sm:$0xff]
  %v16 = vld [vmem:[%s0 + $0x10] sm:$0xff]
  %v17 = vld [vmem:[%s0 + $0x18] sm:$0xff]
  %v18 = vld [vmem:[%s0 + $0x20] sm:$0xff]
  %v19 = vld [vmem:[%s0 + $0x28] sm:$0xff]
  %v20 = vld [vmem:[%s0 + $0x30] sm:$0xff]
  %v21 = vld [vmem:[%s0 + $0x38] sm:$0xff]
  %v22 = vld [vmem:[%s1] sm:$0xff]
  %v23 = vld [vmem:[%s1 + $0x8] sm:$0xff]
  %v24 = vld [vmem:[%s1 + $0x10] sm:$0xff]
  %v25 = vld [vmem:[%s1 + $0x18] sm:$0xff]
  %v26 = vld [vmem:[%s1 + $0x20] sm:$0xff]
  %v27 = vld [vmem:[%s1 + $0x28] sm:$0xff]
  %v28 = vld [vmem:[%s1 + $0x30] sm:$0xff]
  %v29 = vld [vmem:[%s1 + $0x38] sm:$0xff]
  %v30 = vld [vmem:[%s1 + $0x40] sm:$0xff]
  %v31 = vld [vmem:[%s1 + $0x48] sm:$0xff]
  %v32 = vld [vmem:[%s1 + $0x50] sm:$0xff]
  %v33 = vld [vmem:[%s1 + $0x58] sm:$0xff]
  %v34 = vld [vmem:[%s1 + $0x60] sm:$0xff]
  %v35 = vld [vmem:[%s1 + $0x68] sm:$0xff]
  %v36 = vld [vmem:[%s1 + $0x70] sm:$0xff]
  %v37 = vld [vmem:[%s1 + $0x78] sm:$0xff]
  %v38 = vld [vmem:[%s2] sm:$0x1]
  %v40 = vperm.slane %v38, 0
  %42 = vmatpush.msra.mxu0 %v37
  %43 = vmatpush.msra.mxu0 %v36
  %44 = vmatpush.msra.mxu0 %v35
  %45 = vmatpush.msra.mxu0 %v34
  %46 = vmatpush.msra.mxu0 %v33
  %47 = vmatpush.msra.mxu0 %v32
  %48 = vmatpush.msra.mxu0 %v31
  %49 = vmatpush.msra.mxu0 %v30
  %50 = vmatpush.msra.mxu0 %v29
  %51 = vmatpush.msra.mxu0 %v28
  %52 = vmatpush.msra.mxu0 %v27
  %53 = vmatpush.msra.mxu0 %v26
  %54 = vmatpush.msra.mxu0 %v25
  %55 = vmatpush.msra.mxu0 %v24
  %56 = vmatpush.msra.mxu0 %v23
  %57 = vmatpush.msra.mxu0 %v22
  %58 = vmatmul.f32.gmra.mxu0 %v14
  %v59 = vpop.f32.mrf.mxu0
  %v60 = vadd.f32 %v40, %v59
  %61 = vmatmul.f32.gmra.mxu0 %v15
  %v62 = vpop.f32.mrf.mxu0
  %v63 = vadd.f32 %v40, %v62
  %64 = vmatmul.f32.gmra.mxu0 %v16
  %v65 = vpop.f32.mrf.mxu0
  %v66 = vadd.f32 %v40, %v65
  %67 = vmatmul.f32.gmra.mxu0 %v17
  %v68 = vpop.f32.mrf.mxu0
  %v69 = vadd.f32 %v40, %v68
  %70 = vmatmul.f32.gmra.mxu0 %v18
  %v71 = vpop.f32.mrf.mxu0
  %v72 = vadd.f32 %v40, %v71
  %73 = vmatmul.f32.gmra.mxu0 %v19
  %v74 = vpop.f32.mrf.mxu0
  %v75 = vadd.f32 %v40, %v74
  %76 = vmatmul.f32.gmra.mxu0 %v20
  %v77 = vpop.f32.mrf.mxu0
  %v78 = vadd.f32 %v40, %v77
  %79 = vmatmul.f32.gmra.mxu0 %v21
  %v80 = vpop.f32.mrf.mxu0
  %v81 = vadd.f32 %v40, %v80
  %82 = vdwg.mxu0
  %83 = vst [vmem:[%s3] sm:$0xff] %v60
  %84 = vst [vmem:[%s3 + $0x8] sm:$0xff] %v63
  %85 = vst [vmem:[%s3 + $0x10] sm:$0xff] %v66
  %86 = vst [vmem:[%s3 + $0x18] sm:$0xff] %v69
  %87 = vst [vmem:[%s3 + $0x20] sm:$0xff] %v72
  %88 = vst [vmem:[%s3 + $0x28] sm:$0xff] %v75
  %89 = vst [vmem:[%s3 + $0x30] sm:$0xff] %v78
  %90 = vst [vmem:[%s3 + $0x38] sm:$0xff] %v81
  // Predicated region
  $region14: #{text_forward.3} parent=0 // pred_check
    _
  $region15: #{text_forward.3} parent=0 // pred_check_branch
    %92 = sbr.rel (0) target = $region17
  $region16: #{text_forward.3} parent=0 // pred_region
    _
  $region17: #{text_forward.3} parent=0 // pred_fallthru
    _
  // Predicated region
  $region18: #{text_forward.3} parent=0 // pred_check
    _
  $region19: #{text_forward.3} parent=0 // pred_check_branch
    %94 = sbr.rel (0) target = $region21
  $region20: #{text_forward.3} parent=0 // pred_region
    _
  $region21: #{text_forward.3} parent=0 // pred_fallthru
    _

// kernel: text_forward.2
$region0: #{text_forward.2}
  #allocation0 [shape = 'u32[]', space=smem, size = 0x4, offset = 0x4, fixed_abs, tag = 'smem constant byte address 0x4 - core index']
  #allocation1 [shape = 'u32[72,128]{1,0:T(1,128)}', space=vmem, size = 0x9000, scoped, tag = 'internal scratch']
  #allocation2 [shape = 'f32[8,128]{1,0:T(8,128)}', space=vmem, size = 0x1000, scoped, tag = 'scratch operand']
  %s0 = inlined_call_operand.vmem [shape: f32[8,8,128], index: 0, kind: input, shape index: {}]
  %s1 = inlined_call_operand.vmem [shape: f32[128,128], index: 1, kind: input, shape index: {}]
  %s2 = inlined_call_operand.vmem [shape: f32[8,128], index: 2, kind: input, shape index: {}]
  %s3 = inlined_call_operand.vmem [shape: f32[8,8,128], index: 3, kind: output, shape index: {}]
  %s4 = sld [smem:[#allocation0]]
  $region26: #{text_forward.2} parent=0
    _
  %s6 = ssub.s32 1, %s4
  %s7 = scalar_select 0, %s6, %s4
  // Predicated region
  $region2: #{text_forward.2} parent=0 // pred_check
    _
  $region3: #{text_forward.2} parent=0 // pred_check_branch
    %9 = sbr.rel (0) target = $region5
  $region4: #{text_forward.2} parent=0 // pred_region
    _
  $region5: #{text_forward.2} parent=0 // pred_fallthru
    _
  // Predicated region
  $region6: #{text_forward.2} parent=0 // pred_check
    _
  $region7: #{text_forward.2} parent=0 // pred_check_branch
    %11 = sbr.rel (0) target = $region9
  $region8: #{text_forward.2} parent=0 // pred_region
    _
  $region9: #{text_forward.2} parent=0 // pred_fallthru
    _
  // Predicated region
  $region10: #{text_forward.2} parent=0 // pred_check
    _
  $region11: #{text_forward.2} parent=0 // pred_check_branch
    %13 = sbr.rel (0) target = $region13
  $region12: #{text_forward.2} parent=0 // pred_region
    _
  $region13: #{text_forward.2} parent=0 // pred_fallthru
    _
  %p14 = scmp.eq.s32.totalorder 0, 0
  // Predicated region
  $region14: #{text_forward.2} parent=0 // pred_check
    %p15 = pneg %p14
  $region15: #{text_forward.2} parent=0 // pred_check_branch
    %17 = sbr.rel (%p15) target = $region17
  $region16: #{text_forward.2} parent=0 // pred_region
    %v18 = vld [vmem:[%s2] sm:$0xff]
    %19 = vst [vmem:[#allocation2] sm:$0xff] %v18
  $region17: #{text_forward.2} parent=0 // pred_fallthru
    _
  %v20 = vld [vmem:[#allocation2] sm:$0xff]
  %v21 = vld [vmem:[%s0] sm:$0xff]
  %v22 = vld [vmem:[%s1] sm:$0xff]
  %v23 = vld [vmem:[%s1 + $0x8] sm:$0xff]
  %v24 = vld [vmem:[%s1 + $0x10] sm:$0xff]
  %v25 = vld [vmem:[%s1 + $0x18] sm:$0xff]
  %v26 = vld [vmem:[%s1 + $0x20] sm:$0xff]
  %v27 = vld [vmem:[%s1 + $0x28] sm:$0xff]
  %v28 = vld [vmem:[%s1 + $0x30] sm:$0xff]
  %v29 = vld [vmem:[%s1 + $0x38] sm:$0xff]
  %v30 = vld [vmem:[%s1 + $0x40] sm:$0xff]
  %v31 = vld [vmem:[%s1 + $0x48] sm:$0xff]
  %v32 = vld [vmem:[%s1 + $0x50] sm:$0xff]
  %v33 = vld [vmem:[%s1 + $0x58] sm:$0xff]
  %v34 = vld [vmem:[%s1 + $0x60] sm:$0xff]
  %v35 = vld [vmem:[%s1 + $0x68] sm:$0xff]
  %v36 = vld [vmem:[%s1 + $0x70] sm:$0xff]
  %v37 = vld [vmem:[%s1 + $0x78] sm:$0xff]
  %38 = vmatpush.msra.mxu0 %v37
  %39 = vmatpush.msra.mxu0 %v36
  %40 = vmatpush.msra.mxu0 %v35
  %41 = vmatpush.msra.mxu0 %v34
  %42 = vmatpush.msra.mxu0 %v33
  %43 = vmatpush.msra.mxu0 %v32
  %44 = vmatpush.msra.mxu0 %v31
  %45 = vmatpush.msra.mxu0 %v30
  %46 = vmatpush.msra.mxu0 %v29
  %47 = vmatpush.msra.mxu0 %v28
  %48 = vmatpush.msra.mxu0 %v27
  %49 = vmatpush.msra.mxu0 %v26
  %50 = vmatpush.msra.mxu0 %v25
  %51 = vmatpush.msra.mxu0 %v24
  %52 = vmatpush.msra.mxu0 %v23
  %53 = vmatpush.msra.mxu0 %v22
  %54 = vmatmul.f32.gmra.mxu0 %v20
  %v55 = vpop.f32.mrf.mxu0
  %v56 = vadd.f32 0.0, %v55
  %57 = vdwg.mxu0
  %v58 = vadd.f32 %v21, %v56
  %v59 = vtanh.pop %v58
  %60 = vst [vmem:[%s3] sm:$0xff] %v59
  %s61 = scalar_lea.vmem %s0, 8
  %v62 = vld [vmem:[%s61] sm:$0xff]
  %v63 = vld [vmem:[%s1] sm:$0xff]
  %v64 = vld [vmem:[%s1 + $0x8] sm:$0xff]
  %v65 = vld [vmem:[%s1 + $0x10] sm:$0xff]
  %v66 = vld [vmem:[%s1 + $0x18] sm:$0xff]
  %v67 = vld [vmem:[%s1 + $0x20] sm:$0xff]
  %v68 = vld [vmem:[%s1 + $0x28] sm:$0xff]
  %v69 = vld [vmem:[%s1 + $0x30] sm:$0xff]
  %v70 = vld [vmem:[%s1 + $0x38] sm:$0xff]
  %v71 = vld [vmem:[%s1 + $0x40] sm:$0xff]
  %v72 = vld [vmem:[%s1 + $0x48] sm:$0xff]
  %v73 = vld [vmem:[%s1 + $0x50] sm:$0xff]
  %v74 = vld [vmem:[%s1 + $0x58] sm:$0xff]
  %v75 = vld [vmem:[%s1 + $0x60] sm:$0xff]
  %v76 = vld [vmem:[%s1 + $0x68] sm:$0xff]
  %v77 = vld [vmem:[%s1 + $0x70] sm:$0xff]
  %v78 = vld [vmem:[%s1 + $0x78] sm:$0xff]
  %79 = vmatpush.msra.mxu0 %v78
  %80 = vmatpush.msra.mxu0 %v77
  %81 = vmatpush.msra.mxu0 %v76
  %82 = vmatpush.msra.mxu0 %v75
  %83 = vmatpush.msra.mxu0 %v74
  %84 = vmatpush.msra.mxu0 %v73
  %85 = vmatpush.msra.mxu0 %v72
  %86 = vmatpush.msra.mxu0 %v71
  %87 = vmatpush.msra.mxu0 %v70
  %88 = vmatpush.msra.mxu0 %v69
  %89 = vmatpush.msra.mxu0 %v68
  %90 = vmatpush.msra.mxu0 %v67
  %91 = vmatpush.msra.mxu0 %v66
  %92 = vmatpush.msra.mxu0 %v65
  %93 = vmatpush.msra.mxu0 %v64
  %94 = vmatpush.msra.mxu0 %v63
  %95 = vmatmul.f32.gmra.mxu0 %v59
  %v96 = vpop.f32.mrf.mxu0
  %v97 = vadd.f32 0.0, %v96
  %98 = vdwg.mxu0
  %v99 = vadd.f32 %v62, %v97
  %v100 = vtanh.pop %v99
  %s101 = scalar_lea.vmem %s3, 8
  %102 = vst [vmem:[%s101] sm:$0xff] %v100
  %s103 = scalar_lea.vmem %s0, 16
  %v104 = vld [vmem:[%s103] sm:$0xff]
  %v105 = vld [vmem:[%s1] sm:$0xff]
  %v106 = vld [vmem:[%s1 + $0x8] sm:$0xff]
  %v107 = vld [vmem:[%s1 + $0x10] sm:$0xff]
  %v108 = vld [vmem:[%s1 + $0x18] sm:$0xff]
  %v109 = vld [vmem:[%s1 + $0x20] sm:$0xff]
  %v110 = vld [vmem:[%s1 + $0x28] sm:$0xff]
  %v111 = vld [vmem:[%s1 + $0x30] sm:$0xff]
  %v112 = vld [vmem:[%s1 + $0x38] sm:$0xff]
  %v113 = vld [vmem:[%s1 + $0x40] sm:$0xff]
  %v114 = vld [vmem:[%s1 + $0x48] sm:$0xff]
  %v115 = vld [vmem:[%s1 + $0x50] sm:$0xff]
  %v116 = vld [vmem:[%s1 + $0x58] sm:$0xff]
  %v117 = vld [vmem:[%s1 + $0x60] sm:$0xff]
  %v118 = vld [vmem:[%s1 + $0x68] sm:$0xff]
  %v119 = vld [vmem:[%s1 + $0x70] sm:$0xff]
  %v120 = vld [vmem:[%s1 + $0x78] sm:$0xff]
  %121 = vmatpush.msra.mxu0 %v120
  %122 = vmatpush.msra.mxu0 %v119
  %123 = vmatpush.msra.mxu0 %v118
  %124 = vmatpush.msra.mxu0 %v117
  %125 = vmatpush.msra.mxu0 %v116
  %126 = vmatpush.msra.mxu0 %v115
  %127 = vmatpush.msra.mxu0 %v114
  %128 = vmatpush.msra.mxu0 %v113
  %129 = vmatpush.msra.mxu0 %v112
  %130 = vmatpush.msra.mxu0 %v111
  %131 = vmatpush.msra.mxu0 %v110
  %132 = vmatpush.msra.mxu0 %v109
  %133 = vmatpush.msra.mxu0 %v108
  %134 = vmatpush.msra.mxu0 %v107
  %135 = vmatpush.msra.mxu0 %v106
  %136 = vmatpush.msra.mxu0 %v105
  %137 = vmatmul.f32.gmra.mxu0 %v100
  %v138 = vpop.f32.mrf.mxu0
  %v139 = vadd.f32 0.0, %v138
  %140 = vdwg.mxu0
  %v141 = vadd.f32 %v104, %v139
  %v142 = vtanh.pop %v141
  %s143 = scalar_lea.vmem %s3, 16
  %144 = vst [vmem:[%s143] sm:$0xff] %v142
  %s145 = scalar_lea.vmem %s0, 24
  %v146 = vld [vmem:[%s145] sm:$0xff]
  %v147 = vld [vmem:[%s1] sm:$0xff]
  %v148 = vld [vmem:[%s1 + $0x8] sm:$0xff]
  %v149 = vld [vmem:[%s1 + $0x10] sm:$0xff]
  %v150 = vld [vmem:[%s1 + $0x18] sm:$0xff]
  %v151 = vld [vmem:[%s1 + $0x20] sm:$0xff]
  %v152 = vld [vmem:[%s1 + $0x28] sm:$0xff]
  %v153 = vld [vmem:[%s1 + $0x30] sm:$0xff]
  %v154 = vld [vmem:[%s1 + $0x38] sm:$0xff]
  %v155 = vld [vmem:[%s1 + $0x40] sm:$0xff]
  %v156 = vld [vmem:[%s1 + $0x48] sm:$0xff]
  %v157 = vld [vmem:[%s1 + $0x50] sm:$0xff]
  %v158 = vld [vmem:[%s1 + $0x58] sm:$0xff]
  %v159 = vld [vmem:[%s1 + $0x60] sm:$0xff]
  %v160 = vld [vmem:[%s1 + $0x68] sm:$0xff]
  %v161 = vld [vmem:[%s1 + $0x70] sm:$0xff]
  %v162 = vld [vmem:[%s1 + $0x78] sm:$0xff]
  %163 = vmatpush.msra.mxu0 %v162
  %164 = vmatpush.msra.mxu0 %v161
  %165 = vmatpush.msra.mxu0 %v160
  %166 = vmatpush.msra.mxu0 %v159
  %167 = vmatpush.msra.mxu0 %v158
  %168 = vmatpush.msra.mxu0 %v157
  %169 = vmatpush.msra.mxu0 %v156
  %170 = vmatpush.msra.mxu0 %v155
  %171 = vmatpush.msra.mxu0 %v154
  %172 = vmatpush.msra.mxu0 %v153
  %173 = vmatpush.msra.mxu0 %v152
  %174 = vmatpush.msra.mxu0 %v151
  %175 = vmatpush.msra.mxu0 %v150
  %176 = vmatpush.msra.mxu0 %v149
  %177 = vmatpush.msra.mxu0 %v148
  %178 = vmatpush.msra.mxu0 %v147
  %179 = vmatmul.f32.gmra.mxu0 %v142
  %v180 = vpop.f32.mrf.mxu0
  %v181 = vadd.f32 0.0, %v180
  %182 = vdwg.mxu0
  %v183 = vadd.f32 %v146, %v181
  %v184 = vtanh.pop %v183
  %s185 = scalar_lea.vmem %s3, 24
  %186 = vst [vmem:[%s185] sm:$0xff] %v184
  %s187 = scalar_lea.vmem %s0, 32
  %v188 = vld [vmem:[%s187] sm:$0xff]
  %v189 = vld [vmem:[%s1] sm:$0xff]
  %v190 = vld [vmem:[%s1 + $0x8] sm:$0xff]
  %v191 = vld [vmem:[%s1 + $0x10] sm:$0xff]
  %v192 = vld [vmem:[%s1 + $0x18] sm:$0xff]
  %v193 = vld [vmem:[%s1 + $0x20] sm:$0xff]
  %v194 = vld [vmem:[%s1 + $0x28] sm:$0xff]
  %v195 = vld [vmem:[%s1 + $0x30] sm:$0xff]
  %v196 = vld [vmem:[%s1 + $0x38] sm:$0xff]
  %v197 = vld [vmem:[%s1 + $0x40] sm:$0xff]
  %v198 = vld [vmem:[%s1 + $0x48] sm:$0xff]
  %v199 = vld [vmem:[%s1 + $0x50] sm:$0xff]
  %v200 = vld [vmem:[%s1 + $0x58] sm:$0xff]
  %v201 = vld [vmem:[%s1 + $0x60] sm:$0xff]
  %v202 = vld [vmem:[%s1 + $0x68] sm:$0xff]
  %v203 = vld [vmem:[%s1 + $0x70] sm:$0xff]
  %v204 = vld [vmem:[%s1 + $0x78] sm:$0xff]
  %205 = vmatpush.msra.mxu0 %v204
  %206 = vmatpush.msra.mxu0 %v203
  %207 = vmatpush.msra.mxu0 %v202
  %208 = vmatpush.msra.mxu0 %v201
  %209 = vmatpush.msra.mxu0 %v200
  %210 = vmatpush.msra.mxu0 %v199
  %211 = vmatpush.msra.mxu0 %v198
  %212 = vmatpush.msra.mxu0 %v197
  %213 = vmatpush.msra.mxu0 %v196
  %214 = vmatpush.msra.mxu0 %v195
  %215 = vmatpush.msra.mxu0 %v194
  %216 = vmatpush.msra.mxu0 %v193
  %217 = vmatpush.msra.mxu0 %v192
  %218 = vmatpush.msra.mxu0 %v191
  %219 = vmatpush.msra.mxu0 %v190
  %220 = vmatpush.msra.mxu0 %v189
  %221 = vmatmul.f32.gmra.mxu0 %v184
  %v222 = vpop.f32.mrf.mxu0
  %v223 = vadd.f32 0.0, %v222
  %224 = vdwg.mxu0
  %v225 = vadd.f32 %v188, %v223
  %v226 = vtanh.pop %v225
  %s227 = scalar_lea.vmem %s3, 32
  %228 = vst [vmem:[%s227] sm:$0xff] %v226
  %s229 = scalar_lea.vmem %s0, 40
  %v230 = vld [vmem:[%s229] sm:$0xff]
  %v231 = vld [vmem:[%s1] sm:$0xff]
  %v232 = vld [vmem:[%s1 + $0x8] sm:$0xff]
  %v233 = vld [vmem:[%s1 + $0x10] sm:$0xff]
  %v234 = vld [vmem:[%s1 + $0x18] sm:$0xff]
  %v235 = vld [vmem:[%s1 + $0x20] sm:$0xff]
  %v236 = vld [vmem:[%s1 + $0x28] sm:$0xff]
  %v237 = vld [vmem:[%s1 + $0x30] sm:$0xff]
  %v238 = vld [vmem:[%s1 + $0x38] sm:$0xff]
  %v239 = vld [vmem:[%s1 + $0x40] sm:$0xff]
  %v240 = vld [vmem:[%s1 + $0x48] sm:$0xff]
  %v241 = vld [vmem:[%s1 + $0x50] sm:$0xff]
  %v242 = vld [vmem:[%s1 + $0x58] sm:$0xff]
  %v243 = vld [vmem:[%s1 + $0x60] sm:$0xff]
  %v244 = vld [vmem:[%s1 + $0x68] sm:$0xff]
  %v245 = vld [vmem:[%s1 + $0x70] sm:$0xff]
  %v246 = vld [vmem:[%s1 + $0x78] sm:$0xff]
  %247 = vmatpush.msra.mxu0 %v246
  %248 = vmatpush.msra.mxu0 %v245
  %249 = vmatpush.msra.mxu0 %v244
  %250 = vmatpush.msra.mxu0 %v243
  %251 = vmatpush.msra.mxu0 %v242
  %252 = vmatpush.msra.mxu0 %v241
  %253 = vmatpush.msra.mxu0 %v240
  %254 = vmatpush.msra.mxu0 %v239
  %255 = vmatpush.msra.mxu0 %v238
  %256 = vmatpush.msra.mxu0 %v237
  %257 = vmatpush.msra.mxu0 %v236
  %258 = vmatpush.msra.mxu0 %v235
  %259 = vmatpush.msra.mxu0 %v234
  %260 = vmatpush.msra.mxu0 %v233
  %261 = vmatpush.msra.mxu0 %v232
  %262 = vmatpush.msra.mxu0 %v231
  %263 = vmatmul.f32.gmra.mxu0 %v226
  %v264 = vpop.f32.mrf.mxu0
  %v265 = vadd.f32 0.0, %v264
  %266 = vdwg.mxu0
  %v267 = vadd.f32 %v230, %v265
  %v268 = vtanh.pop %v267
  %s269 = scalar_lea.vmem %s3, 40
  %270 = vst [vmem:[%s269] sm:$0xff] %v268
  %s271 = scalar_lea.vmem %s0, 48
  %v272 = vld [vmem:[%s271] sm:$0xff]
  %v273 = vld [vmem:[%s1] sm:$0xff]
  %v274 = vld [vmem:[%s1 + $0x8] sm:$0xff]
  %v275 = vld [vmem:[%s1 + $0x10] sm:$0xff]
  %v276 = vld [vmem:[%s1 + $0x18] sm:$0xff]
  %v277 = vld [vmem:[%s1 + $0x20] sm:$0xff]
  %v278 = vld [vmem:[%s1 + $0x28] sm:$0xff]
  %v279 = vld [vmem:[%s1 + $0x30] sm:$0xff]
  %v280 = vld [vmem:[%s1 + $0x38] sm:$0xff]
  %v281 = vld [vmem:[%s1 + $0x40] sm:$0xff]
  %v282 = vld [vmem:[%s1 + $0x48] sm:$0xff]
  %v283 = vld [vmem:[%s1 + $0x50] sm:$0xff]
  %v284 = vld [vmem:[%s1 + $0x58] sm:$0xff]
  %v285 = vld [vmem:[%s1 + $0x60] sm:$0xff]
  %v286 = vld [vmem:[%s1 + $0x68] sm:$0xff]
  %v287 = vld [vmem:[%s1 + $0x70] sm:$0xff]
  %v288 = vld [vmem:[%s1 + $0x78] sm:$0xff]
  %289 = vmatpush.msra.mxu0 %v288
  %290 = vmatpush.msra.mxu0 %v287
  %291 = vmatpush.msra.mxu0 %v286
  %292 = vmatpush.msra.mxu0 %v285
  %293 = vmatpush.msra.mxu0 %v284
  %294 = vmatpush.msra.mxu0 %v283
  %295 = vmatpush.msra.mxu0 %v282
  %296 = vmatpush.msra.mxu0 %v281
  %297 = vmatpush.msra.mxu0 %v280
  %298 = vmatpush.msra.mxu0 %v279
  %299 = vmatpush.msra.mxu0 %v278
  %300 = vmatpush.msra.mxu0 %v277
  %301 = vmatpush.msra.mxu0 %v276
  %302 = vmatpush.msra.mxu0 %v275
  %303 = vmatpush.msra.mxu0 %v274
  %304 = vmatpush.msra.mxu0 %v273
  %305 = vmatmul.f32.gmra.mxu0 %v268
  %v306 = vpop.f32.mrf.mxu0
  %v307 = vadd.f32 0.0, %v306
  %308 = vdwg.mxu0
  %v309 = vadd.f32 %v272, %v307
  %v310 = vtanh.pop %v309
  %s311 = scalar_lea.vmem %s3, 48
  %312 = vst [vmem:[%s311] sm:$0xff] %v310
  %s313 = scalar_lea.vmem %s0, 56
  %v314 = vld [vmem:[%s313] sm:$0xff]
  %v315 = vld [vmem:[%s1] sm:$0xff]
  %v316 = vld [vmem:[%s1 + $0x8] sm:$0xff]
  %v317 = vld [vmem:[%s1 + $0x10] sm:$0xff]
  %v318 = vld [vmem:[%s1 + $0x18] sm:$0xff]
  %v319 = vld [vmem:[%s1 + $0x20] sm:$0xff]
  %v320 = vld [vmem:[%s1 + $0x28] sm:$0xff]
  %v321 = vld [vmem:[%s1 + $0x30] sm:$0xff]
  %v322 = vld [vmem:[%s1 + $0x38] sm:$0xff]
  %v323 = vld [vmem:[%s1 + $0x40] sm:$0xff]
  %v324 = vld [vmem:[%s1 + $0x48] sm:$0xff]
  %v325 = vld [vmem:[%s1 + $0x50] sm:$0xff]
  %v326 = vld [vmem:[%s1 + $0x58] sm:$0xff]
  %v327 = vld [vmem:[%s1 + $0x60] sm:$0xff]
  %v328 = vld [vmem:[%s1 + $0x68] sm:$0xff]
  %v329 = vld [vmem:[%s1 + $0x70] sm:$0xff]
  %v330 = vld [vmem:[%s1 + $0x78] sm:$0xff]
  %331 = vmatpush.msra.mxu0 %v330
  %332 = vmatpush.msra.mxu0 %v329
  %333 = vmatpush.msra.mxu0 %v328
  %334 = vmatpush.msra.mxu0 %v327
  %335 = vmatpush.msra.mxu0 %v326
  %336 = vmatpush.msra.mxu0 %v325
  %337 = vmatpush.msra.mxu0 %v324
  %338 = vmatpush.msra.mxu0 %v323
  %339 = vmatpush.msra.mxu0 %v322
  %340 = vmatpush.msra.mxu0 %v321
  %341 = vmatpush.msra.mxu0 %v320
  %342 = vmatpush.msra.mxu0 %v319
  %343 = vmatpush.msra.mxu0 %v318
  %344 = vmatpush.msra.mxu0 %v317
  %345 = vmatpush.msra.mxu0 %v316
  %346 = vmatpush.msra.mxu0 %v315
  %347 = vmatmul.f32.gmra.mxu0 %v310
  %v348 = vpop.f32.mrf.mxu0
  %v349 = vadd.f32 0.0, %v348
  %350 = vdwg.mxu0
  %v351 = vadd.f32 %v314, %v349
  %v352 = vtanh.pop %v351
  %s353 = scalar_lea.vmem %s3, 56
  %354 = vst [vmem:[%s353] sm:$0xff] %v352
  %355 = vst [vmem:[#allocation2] sm:$0xff] %v352
  // Predicated region
  $region18: #{text_forward.2} parent=0 // pred_check
    _
  $region19: #{text_forward.2} parent=0 // pred_check_branch
    %357 = sbr.rel (0) target = $region21
  $region20: #{text_forward.2} parent=0 // pred_region
    _
  $region21: #{text_forward.2} parent=0 // pred_fallthru
    _
  // Predicated region
  $region22: #{text_forward.2} parent=0 // pred_check
    _
  $region23: #{text_forward.2} parent=0 // pred_check_branch
    %359 = sbr.rel (0) target = $region25
  $region24: #{text_forward.2} parent=0 // pred_region
    _
  $region25: #{text_forward.2} parent=0 // pred_fallthru
    _

</llo_original>
